<compile_context>
chip_gen: v6e
topology: v6e:2x2x1
jax: 0.10.0
libtpu: 0.0.40
codegen_flags: <defaults>
</compile_context>

<pallas_src>
import functools

import jax
import jax.numpy as jnp
from jax.experimental import pallas as pl
from jax.experimental.pallas import tpu as pltpu


# ----------------------------------------------------------------------------
# Fused encoder kernel
# ----------------------------------------------------------------------------
def _encoder_fused_kernel(*refs, num_hidden_layers, non_linear):
    """refs = (x, w0, b0, w1, b1, ..., w_head, b_head, out).

    Computes  h = leaky_relu?(x @ w0 + b0) ... ;  out = h @ w_head + b_head
    entirely in VMEM/registers.  Accumulation and elementwise math in f32.
    """
    x_ref = refs[0]
    out_ref = refs[-1]
    param_refs = refs[1:-1]

    h = x_ref[...].astype(jnp.float32)

    # Hidden Linear layers (encoder_layers in the PyTorch module).
    for i in range(num_hidden_layers):
        w = param_refs[2 * i][...]
        b = param_refs[2 * i + 1][...].astype(jnp.float32)
        h = jnp.dot(h.astype(w.dtype), w, preferred_element_type=jnp.float32) + b
        if non_linear:
            # F.leaky_relu default negative_slope = 0.01 (math kept in f32).
            h = jnp.where(h > 0, h, 0.01 * h)

    # Fused mean|logvar head: single matmul, lane-dense (padded) output.
    w_head = param_refs[-2][...]
    b_head = param_refs[-1][...].astype(jnp.float32)
    y = jnp.dot(h.astype(w_head.dtype), w_head,
                preferred_element_type=jnp.float32) + b_head
    out_ref[...] = y.astype(out_ref.dtype)


def encoder_forward_pallas(x, enc_params, w_head, b_head, *,
                           non_linear, max_tile_b=256):
    """Run the fused encoder. Returns the padded (batch, head_pad) output."""
    batch, in_dim = x.shape
    head_pad = w_head.shape[1]

    # Batch tile: full batch for small inputs; multiple-of-8 tiles for large
    # batches so the activation DMA double-buffers and (on v7x) the parallel
    # grid axis occupies both TensorCores.
    if batch <= max_tile_b:
        tile_b = batch
    else:
        tile_b = max_tile_b  # multiple of 8 by construction (256)
    grid = (pl.cdiv(batch, tile_b),)

    in_specs = [pl.BlockSpec((tile_b, in_dim), lambda i: (i, 0))]
    flat_params = []
    for w, b in enc_params:
        # Constant index_map -> weights/biases DMA'd once, stay VMEM-resident.
        in_specs.append(pl.BlockSpec(w.shape, lambda i: (0, 0)))
        in_specs.append(pl.BlockSpec(b.shape, lambda i: (0, 0)))
        flat_params += [w, b]
    in_specs.append(pl.BlockSpec(w_head.shape, lambda i: (0, 0)))
    in_specs.append(pl.BlockSpec(b_head.shape, lambda i: (0, 0)))
    flat_params += [w_head, b_head]

    out_specs = pl.BlockSpec((tile_b, head_pad), lambda i: (i, 0))

    return pl.pallas_call(
        functools.partial(
            _encoder_fused_kernel,
            num_hidden_layers=len(enc_params),
            non_linear=non_linear,
        ),
        out_shape=jax.ShapeDtypeStruct((batch, head_pad), jnp.float32),
        grid=grid,
        in_specs=in_specs,
        out_specs=out_specs,
        compiler_params=pltpu.CompilerParams(
            dimension_semantics=("parallel",)),
    )(x, *flat_params)


def _round_up(n, m):
    return ((n + m - 1) // m) * m


# ----------------------------------------------------------------------------
# Encoder module (parameter container + forward)
# ----------------------------------------------------------------------------
class Encoder:
    def __init__(self, input_dim, hidden_dim, variational=True, non_linear=False,
                 param_dtype=jnp.float32, key=jax.random.PRNGKey(0)):
        self.input_size = input_dim
        self.hidden_dims = hidden_dim
        self.z_dim = hidden_dim[-1]
        self.variational = variational
        self.non_linear = non_linear
        self.layer_sizes_encoder = [input_dim] + list(hidden_dim)
        self.param_dtype = param_dtype

        def init_linear(k, d_in, d_out):
            # Deterministic init, roughly matching nn.Linear's uniform scale.
            kw, kb = jax.random.split(k)
            bound = 1.0 / (d_in ** 0.5)
            w = jax.random.uniform(kw, (d_in, d_out), jnp.float32, -bound, bound)
            b = jax.random.uniform(kb, (1, d_out), jnp.float32, -bound, bound)
            return w, b

        sizes = self.layer_sizes_encoder
        keys = jax.random.split(key, len(sizes) + 1)

        # encoder_layers = all Linear layers except the last pair.
        self.encoder_params_f32 = []
        for i, (d0, d1) in enumerate(zip(sizes[:-2], sizes[1:-1])):
            self.encoder_params_f32.append(init_linear(keys[i], d0, d1))

        # mean / logvar heads: sizes[-2] -> sizes[-1]  (kept for reference).
        self.w_mu, self.b_mu = init_linear(keys[-2], sizes[-2], sizes[-1])
        self.w_lv, self.b_lv = init_linear(keys[-1], sizes[-2], sizes[-1])

        # --- Fused, lane-dense head parameters used by the kernel -----------
        # Concatenate mu|logvar and zero-pad the output dim to a multiple of
        # 128 so the kernel's single output store is unmasked/lane-dense.
        hidden_last = sizes[-2]
        z = self.z_dim
        head_pad = _round_up(max(2 * z, 128), 128)
        w_head = jnp.zeros((hidden_last, head_pad), jnp.float32)
        w_head = w_head.at[:, :z].set(self.w_mu).at[:, z:2 * z].set(self.w_lv)
        b_head = jnp.zeros((1, head_pad), jnp.float32)
        b_head = b_head.at[:, :z].set(self.b_mu[0]).at[:, z:2 * z].set(self.b_lv[0])

        # Kernel-side parameter dtype (bf16 recommended on v5e/v6e/v7x for
        # larger models; f32 here keeps the demo check tight).
        self.encoder_params = [(w.astype(param_dtype), b.astype(param_dtype))
                               for (w, b) in self.encoder_params_f32]
        self.w_head = w_head.astype(param_dtype)
        self.b_head = b_head.astype(param_dtype)
        self.head_pad = head_pad

    def forward(self, x):
        out = encoder_forward_pallas(
            x, self.encoder_params, self.w_head, self.b_head,
            non_linear=self.non_linear)
        z = self.z_dim
        mu = out[:, :z]
        logvar = out[:, z:2 * z]
        return mu, logvar

    __call__ = forward

    # Pure-JAX reference (same math, no Pallas) for correctness checks.
    def reference(self, x):
        h = x
        for w, b in self.encoder_params_f32:
            h = h @ w + b
            if self.non_linear:
                h = jnp.where(h > 0, h, 0.01 * h)
        mu = h @ self.w_mu + self.b_mu
        lv = h @ self.w_lv + self.b_lv
        return mu, lv


# ----------------------------------------------------------------------------
# Main
# ----------------------------------------------------------------------------
if __name__ == "__main__":
    key = jax.random.PRNGKey(0)
    k_x, k_p1, k_p2 = jax.random.split(key, 3)

    batch = 8
    input_dim = 32
    hidden_dim = [64, 16]  # z_dim = 16

    x = jax.random.normal(k_x, (batch, input_dim), dtype=jnp.float32)

    ok = True
    for non_linear, k_p in ((False, k_p1), (True, k_p2)):
        enc = Encoder(input_dim, hidden_dim, variational=True,
                      non_linear=non_linear, key=k_p)
        mu, logvar = enc(x)
        jax.block_until_ready((mu, logvar))

        mu_ref, lv_ref = enc.reference(x)

        ok &= mu.shape == (batch, hidden_dim[-1])
        ok &= logvar.shape == (batch, hidden_dim[-1])
        ok &= bool(jnp.allclose(mu, mu_ref, atol=1e-5, rtol=1e-5))
        ok &= bool(jnp.allclose(logvar, lv_ref, atol=1e-5, rtol=1e-5))

    assert ok
    print("KERNEL_OK")
</pallas_src>

<mosaic_0001>
module attributes {stable_mosaic.version = 11 : i64} {
  func.func @_encoder_fused_kernel(%arg0: i32, %arg1: memref<8x32xf32, #tpu.memory_space<vmem>>, %arg2: memref<32x64xf32, #tpu.memory_space<vmem>>, %arg3: memref<1x64xf32, #tpu.memory_space<vmem>>, %arg4: memref<64x128xf32, #tpu.memory_space<vmem>>, %arg5: memref<1x128xf32, #tpu.memory_space<vmem>>, %arg6: memref<8x128xf32, #tpu.memory_space<vmem>>) attributes {dimension_semantics = [#tpu.dimension_semantics<parallel>], iteration_bounds = array<i64: 1>, scalar_prefetch = 0 : i64, scratch_operands = 0 : i64, tpu.core_type = #tpu.core_type<tc>, window_params = [{transform_indices = @transform_0, window_bounds = array<i64: 8, 32>}, {pipeline_mode = #tpu.pipeline_mode<synchronous>, transform_indices = @transform_1, window_bounds = array<i64: 32, 64>}, {pipeline_mode = #tpu.pipeline_mode<synchronous>, transform_indices = @transform_2, window_bounds = array<i64: 1, 64>}, {pipeline_mode = #tpu.pipeline_mode<synchronous>, transform_indices = @transform_3, window_bounds = array<i64: 64, 128>}, {pipeline_mode = #tpu.pipeline_mode<synchronous>, transform_indices = @transform_4, window_bounds = array<i64: 1, 128>}, {transform_indices = @transform_5, window_bounds = array<i64: 8, 128>}]} {
    %c0 = arith.constant 0 : index
    %c0_0 = arith.constant 0 : index
    %0 = vector.load %arg1[%c0, %c0_0] : memref<8x32xf32, #tpu.memory_space<vmem>>, vector<8x32xf32>
    %c0_1 = arith.constant 0 : index
    %c0_2 = arith.constant 0 : index
    %1 = vector.load %arg2[%c0_1, %c0_2] : memref<32x64xf32, #tpu.memory_space<vmem>>, vector<32x64xf32>
    %c0_3 = arith.constant 0 : index
    %c0_4 = arith.constant 0 : index
    %2 = vector.load %arg3[%c0_3, %c0_4] : memref<1x64xf32, #tpu.memory_space<vmem>>, vector<1x64xf32>
    %cst = arith.constant dense<0.000000e+00> : vector<8x64xf32>
    %3 = tpu.matmul %0, %1, %cst {dimension_numbers = #tpu.dot_dimension_numbers<[1], [0], [0], [1], [0, 0, 1, 1], [], []>} : vector<8x32xf32>, vector<32x64xf32>, vector<8x64xf32> -> vector<8x64xf32>
    %4 = vector.broadcast %2 : vector<1x64xf32> to vector<8x64xf32>
    %5 = arith.addf %3, %4 : vector<8x64xf32>
    %c0_5 = arith.constant 0 : index
    %c0_6 = arith.constant 0 : index
    %6 = vector.load %arg4[%c0_5, %c0_6] : memref<64x128xf32, #tpu.memory_space<vmem>>, vector<64x128xf32>
    %c0_7 = arith.constant 0 : index
    %c0_8 = arith.constant 0 : index
    %7 = vector.load %arg5[%c0_7, %c0_8] : memref<1x128xf32, #tpu.memory_space<vmem>>, vector<1x128xf32>
    %cst_9 = arith.constant dense<0.000000e+00> : vector<8x128xf32>
    %8 = tpu.matmul %5, %6, %cst_9 {dimension_numbers = #tpu.dot_dimension_numbers<[1], [0], [0], [1], [0, 0, 1, 1], [], []>} : vector<8x64xf32>, vector<64x128xf32>, vector<8x128xf32> -> vector<8x128xf32>
    %9 = vector.broadcast %7 : vector<1x128xf32> to vector<8x128xf32>
    %10 = arith.addf %8, %9 : vector<8x128xf32>
    %c0_10 = arith.constant 0 : index
    %c0_11 = arith.constant 0 : index
    %11 = vector.load %arg6[%c0_10, %c0_11] : memref<8x128xf32, #tpu.memory_space<vmem>>, vector<8x128xf32>
    tpu.vector_store %arg6[%c0_10, %c0_11], %10 {strides = array<i32>} : memref<8x128xf32, #tpu.memory_space<vmem>>, vector<8x128xf32>,
    return
  }
  func.func @transform_0(%arg0: i32) -> (i32, i32) {
    %c0_i32 = arith.constant 0 : i32
    %c0_i32_0 = arith.constant 0 : i32
    return %arg0, %c0_i32 : i32, i32
  }
  func.func @transform_1(%arg0: i32) -> (i32, i32) {
    %c0_i32 = arith.constant 0 : i32
    %c0_i32_0 = arith.constant 0 : i32
    %c0_i32_1 = arith.constant 0 : i32
    return %c0_i32, %c0_i32_0 : i32, i32
  }
  func.func @transform_2(%arg0: i32) -> (i32, i32) {
    %c0_i32 = arith.constant 0 : i32
    %c0_i32_0 = arith.constant 0 : i32
    %c0_i32_1 = arith.constant 0 : i32
    return %c0_i32, %c0_i32_0 : i32, i32
  }
  func.func @transform_3(%arg0: i32) -> (i32, i32) {
    %c0_i32 = arith.constant 0 : i32
    %c0_i32_0 = arith.constant 0 : i32
    %c0_i32_1 = arith.constant 0 : i32
    return %c0_i32, %c0_i32_0 : i32, i32
  }
  func.func @transform_4(%arg0: i32) -> (i32, i32) {
    %c0_i32 = arith.constant 0 : i32
    %c0_i32_0 = arith.constant 0 : i32
    %c0_i32_1 = arith.constant 0 : i32
    return %c0_i32, %c0_i32_0 : i32, i32
  }
  func.func @transform_5(%arg0: i32) -> (i32, i32) {
    %c0_i32 = arith.constant 0 : i32
    %c0_i32_0 = arith.constant 0 : i32
    return %arg0, %c0_i32 : i32, i32
  }
}

</mosaic_0001>

<llo_original>
// kernel: tpu_custom_call.1
$region0: #{tpu_custom_call.1}
  #allocation0 [shape = 'u32[]', space=smem, size = 0x4, offset = 0x4, fixed_abs, tag = 'smem constant byte address 0x4 - core index']
  #allocation1 [shape = 'u32[144,128]{1,0:T(1,128)}', space=vmem, size = 0x12000, scoped, tag = 'internal scratch']
  %s0 = inlined_call_operand.hbm [shape: f32[8,32], index: 0, kind: input, shape index: {}]
  %s1 = inlined_call_operand.hbm [shape: f32[32,64], index: 1, kind: input, shape index: {}]
  %s2 = inlined_call_operand.vmem [shape: f32[1,64], index: 2, kind: input, shape index: {}]
  %s3 = inlined_call_operand.hbm [shape: f32[64,128], index: 3, kind: input, shape index: {}]
  %s4 = inlined_call_operand.vmem [shape: f32[1,128], index: 4, kind: input, shape index: {}]
  %s5 = inlined_call_operand.hbm [shape: f32[8,128], index: 5, kind: output, shape index: {}]
  %s6 = sld [smem:[#allocation0]]
  $region42: #{tpu_custom_call.1} parent=0
    _
  %s8 = ssub.s32 1, %s6
  %s9 = scalar_select 0, %s8, %s6
  $region1: #{tpu_custom_call.1} parent=0
    #allocation2 [shape = 'u8[4096]{0}', space=vmem, size = 0x1000, scoped, tag = 'input window, operand 0, single buffered']
    #allocation3 [shape = 's32[1]{0}', space=sflag, size = 0x4, scoped, tag = 'scoped memory for tpu_custom_call.1']
    #allocation4 [shape = 's32[1]{0}', space=sflag, size = 0x4, scoped, tag = 'scoped memory for tpu_custom_call.1']
    #allocation5 [shape = 'u8[16384]{0}', space=vmem, size = 0x4000, scoped, tag = 'input window, operand 1, single buffered']
    #allocation6 [shape = 's32[1]{0}', space=sflag, size = 0x4, scoped, tag = 'scoped memory for tpu_custom_call.1']
    #allocation7 [shape = 'u8[32768]{0}', space=vmem, size = 0x8000, scoped, tag = 'input window, operand 3, single buffered']
    #allocation8 [shape = 'u8[4096]{0}', space=vmem, size = 0x1000, scoped, tag = 'output window, operand 0, single buffered']
    %10 = vsyncpa [#allocation3], 0
    %11 = vsyncpa [#allocation6], 0
    %12 = vsyncpa [#allocation4], 0
    // Predicated region
    $region2: #{tpu_custom_call.1} parent=1 // pred_check
      _
    $region3: #{tpu_custom_call.1} parent=1 // pred_check_branch
      %14 = sbr.rel (0) target = $region5
    $region4: #{tpu_custom_call.1} parent=1 // pred_region
      %s16 = ssub.s32 128, 128
      %17 = vsyncadd [#allocation3], %s16
      %s19 = sshll.u32 [#allocation2], 4
      %s20 = int_to_ptr.vmem [resolvable:$true] %s19
      %22 = dma.hbm_to_vmem [thread:$0]  %s0, 128, %s20, [#allocation3]
    $region5: #{tpu_custom_call.1} parent=1 // pred_fallthru
      _
    // Predicated region
    $region6: #{tpu_custom_call.1} parent=1 // pred_check
      _
    $region7: #{tpu_custom_call.1} parent=1 // pred_check_branch
      %24 = sbr.rel (0) target = $region9
    $region8: #{tpu_custom_call.1} parent=1 // pred_region
      %s26 = ssub.s32 512, 512
      %27 = vsyncadd [#allocation6], %s26
      %s28 = sshll.u32 [#allocation5], 4
      %s29 = int_to_ptr.vmem [resolvable:$true] %s28
      %34 = dma.hbm_to_vmem [thread:$0]  %s1, 512, %s29, [#allocation6], 128, 128, 8
    $region9: #{tpu_custom_call.1} parent=1 // pred_fallthru
      _
    // Predicated region
    $region10: #{tpu_custom_call.1} parent=1 // pred_check
      _
    $region11: #{tpu_custom_call.1} parent=1 // pred_check_branch
      %36 = sbr.rel (0) target = $region13
    $region12: #{tpu_custom_call.1} parent=1 // pred_region
      _
    $region13: #{tpu_custom_call.1} parent=1 // pred_fallthru
      _
    // Predicated region
    $region14: #{tpu_custom_call.1} parent=1 // pred_check
      _
    $region15: #{tpu_custom_call.1} parent=1 // pred_check_branch
      %38 = sbr.rel (0) target = $region17
    $region16: #{tpu_custom_call.1} parent=1 // pred_region
      %s40 = ssub.s32 1024, 1024
      %41 = vsyncadd [#allocation6], %s40
      %s42 = sshll.u32 [#allocation7], 4
      %s43 = int_to_ptr.vmem [resolvable:$true] %s42
      %48 = dma.hbm_to_vmem [thread:$0]  %s3, 1024, %s43, [#allocation6], 128, 128, 8
    $region17: #{tpu_custom_call.1} parent=1 // pred_fallthru
      _
    // Predicated region
    $region18: #{tpu_custom_call.1} parent=1 // pred_check
      _
    $region19: #{tpu_custom_call.1} parent=1 // pred_check_branch
      %50 = sbr.rel (0) target = $region21
    $region20: #{tpu_custom_call.1} parent=1 // pred_region
      _
    $region21: #{tpu_custom_call.1} parent=1 // pred_fallthru
      _
    // Predicated region
    $region22: #{tpu_custom_call.1} parent=1 // pred_check
      _
    $region23: #{tpu_custom_call.1} parent=1 // pred_check_branch
      %52 = sbr.rel (0) target = $region25
    $region24: #{tpu_custom_call.1} parent=1 // pred_region
      %53 = dma.done [#allocation3], 128
    $region25: #{tpu_custom_call.1} parent=1 // pred_fallthru
      _
    // Predicated region
    $region26: #{tpu_custom_call.1} parent=1 // pred_check
      _
    $region27: #{tpu_custom_call.1} parent=1 // pred_check_branch
      %55 = sbr.rel (0) target = $region29
    $region28: #{tpu_custom_call.1} parent=1 // pred_region
      %56 = dma.done [#allocation6], 512
    $region29: #{tpu_custom_call.1} parent=1 // pred_fallthru
      _
    // Predicated region
    $region30: #{tpu_custom_call.1} parent=1 // pred_check
      _
    $region31: #{tpu_custom_call.1} parent=1 // pred_check_branch
      %58 = sbr.rel (0) target = $region33
    $region32: #{tpu_custom_call.1} parent=1 // pred_region
      %59 = dma.done [#allocation6], 1024
    $region33: #{tpu_custom_call.1} parent=1 // pred_fallthru
      _
    %v60 = vld [vmem:[#allocation2] sm:$0xff]
    %v61 = vld [vmem:[#allocation5] sm:$0xff]
    %v62 = vld [vmem:[#allocation5 + $0x8] sm:$0xff]
    %v63 = vld [vmem:[#allocation5 + $0x10] sm:$0xff]
    %v64 = vld [vmem:[#allocation5 + $0x18] sm:$0xff]
    %v65 = vld [vmem:[%s2] sm:$0x1]
    %v67 = vlaneseq
    %v68 = vshrl.u32 %v67, 7
    %v69 = vsub.s32 0, %v68
    %v70 = vrot.slane %v65, %v69
    %vm72 = vcmask 261120
    %v74 = vsel %vm72, %v60, 0
    %76 = vmatprep.subr.mxu0 0.0
    %77 = vmatpush1.msra.mxu0 0.0
    %78 = vmatprep.subr.mxu0 0.0
    %79 = vmatpush1.msra.mxu0 0.0
    %80 = vmatprep.subr.mxu0 0.0
    %81 = vmatpush1.msra.mxu0 0.0
    %82 = vmatprep.subr.mxu0 0.0
    %83 = vmatpush1.msra.mxu0 0.0
    %84 = vmatprep.subr.mxu0 0.0
    %85 = vmatpush1.msra.mxu0 0.0
    %86 = vmatprep.subr.mxu0 0.0
    %87 = vmatpush1.msra.mxu0 0.0
    %88 = vmatprep.subr.mxu0 0.0
    %89 = vmatpush1.msra.mxu0 0.0
    %90 = vmatprep.subr.mxu0 0.0
    %91 = vmatpush1.msra.mxu0 0.0
    %92 = vmatprep.subr.mxu0 0.0
    %93 = vmatpush1.msra.mxu0 0.0
    %94 = vmatprep.subr.mxu0 0.0
    %95 = vmatpush1.msra.mxu0 0.0
    %96 = vmatprep.subr.mxu0 0.0
    %97 = vmatpush1.msra.mxu0 0.0
    %98 = vmatprep.subr.mxu0 0.0
    %99 = vmatpush1.msra.mxu0 0.0
    %100 = vmatprep.subr.mxu0 0.0
    %101 = vmatpush1.msra.mxu0 %v64
    %102 = vmatprep.subr.mxu0 0.0
    %103 = vmatpush1.msra.mxu0 %v63
    %104 = vmatprep.subr.mxu0 0.0
    %105 = vmatpush1.msra.mxu0 %v62
    %106 = vmatprep.subr.mxu0 0.0
    %107 = vmatpush1.msra.mxu0 %v61
    %108 = vmatprep.subr.mxu0 0.0
    %109 = vmatpush2.msra.mxu0 0.0
    %110 = vmatprep.subr.mxu0 0.0
    %111 = vmatpush2.msra.mxu0 0.0
    %112 = vmatprep.subr.mxu0 0.0
    %113 = vmatpush2.msra.mxu0 0.0
    %114 = vmatprep.subr.mxu0 0.0
    %115 = vmatpush2.msra.mxu0 0.0
    %116 = vmatprep.subr.mxu0 0.0
    %117 = vmatpush2.msra.mxu0 0.0
    %118 = vmatprep.subr.mxu0 0.0
    %119 = vmatpush2.msra.mxu0 0.0
    %120 = vmatprep.subr.mxu0 0.0
    %121 = vmatpush2.msra.mxu0 0.0
    %122 = vmatprep.subr.mxu0 0.0
    %123 = vmatpush2.msra.mxu0 0.0
    %124 = vmatprep.subr.mxu0 0.0
    %125 = vmatpush2.msra.mxu0 0.0
    %126 = vmatprep.subr.mxu0 0.0
    %127 = vmatpush2.msra.mxu0 0.0
    %128 = vmatprep.subr.mxu0 0.0
    %129 = vmatpush2.msra.mxu0 0.0
    %130 = vmatprep.subr.mxu0 0.0
    %131 = vmatpush2.msra.mxu0 0.0
    %132 = vmatprep.subr.mxu0 0.0
    %133 = vmatpush2.msra.mxu0 0.0
    %134 = vmatprep.subr.mxu0 0.0
    %135 = vmatpush2.msra.mxu0 0.0
    %136 = vmatprep.subr.mxu0 0.0
    %137 = vmatpush2.msra.mxu0 0.0
    %138 = vmatprep.subr.mxu0 0.0
    %139 = vmatpush2.msra.mxu0 0.0
    %140 = vmatprep.mubr.f32.mxu0 0.0
    %141 = vmatmul.mubr.f32.gmra.mxu0 %v74
    %v142 = vpop.f32.mrf.mxu0
    %v143 = vadd.f32 %v70, %v142
    %v144 = vpop.f32.mrf.mxu0
    %145 = vdwg.mxu0
    %v146 = vld [vmem:[#allocation7] sm:$0xff]
    %v147 = vld [vmem:[#allocation7 + $0x8] sm:$0xff]
    %v148 = vld [vmem:[#allocation7 + $0x10] sm:$0xff]
    %v149 = vld [vmem:[#allocation7 + $0x18] sm:$0xff]
    %v150 = vld [vmem:[#allocation7 + $0x20] sm:$0xff]
    %v151 = vld [vmem:[#allocation7 + $0x28] sm:$0xff]
    %v152 = vld [vmem:[#allocation7 + $0x30] sm:$0xff]
    %v153 = vld [vmem:[#allocation7 + $0x38] sm:$0xff]
    %v154 = vld [vmem:[%s4] sm:$0x1]
    %v156 = vlaneseq
    %v157 = vshrl.u32 %v156, 7
    %v158 = vsub.s32 0, %v157
    %v159 = vrot.slane %v154, %v158
    %vm161 = vcmask 523264
    %v163 = vsel %vm161, %v143, 0
    %165 = vmatprep.subr.mxu0 0.0
    %166 = vmatpush1.msra.mxu0 0.0
    %167 = vmatprep.subr.mxu0 0.0
    %168 = vmatpush1.msra.mxu0 0.0
    %169 = vmatprep.subr.mxu0 0.0
    %170 = vmatpush1.msra.mxu0 0.0
    %171 = vmatprep.subr.mxu0 0.0
    %172 = vmatpush1.msra.mxu0 0.0
    %173 = vmatprep.subr.mxu0 0.0
    %174 = vmatpush1.msra.mxu0 0.0
    %175 = vmatprep.subr.mxu0 0.0
    %176 = vmatpush1.msra.mxu0 0.0
    %177 = vmatprep.subr.mxu0 0.0
    %178 = vmatpush1.msra.mxu0 0.0
    %179 = vmatprep.subr.mxu0 0.0
    %180 = vmatpush1.msra.mxu0 0.0
    %181 = vmatprep.subr.mxu0 0.0
    %182 = vmatpush1.msra.mxu0 %v153
    %183 = vmatprep.subr.mxu0 0.0
    %184 = vmatpush1.msra.mxu0 %v152
    %185 = vmatprep.subr.mxu0 0.0
    %186 = vmatpush1.msra.mxu0 %v151
    %187 = vmatprep.subr.mxu0 0.0
    %188 = vmatpush1.msra.mxu0 %v150
    %189 = vmatprep.subr.mxu0 0.0
    %190 = vmatpush1.msra.mxu0 %v149
    %191 = vmatprep.subr.mxu0 0.0
    %192 = vmatpush1.msra.mxu0 %v148
    %193 = vmatprep.subr.mxu0 0.0
    %194 = vmatpush1.msra.mxu0 %v147
    %195 = vmatprep.subr.mxu0 0.0
    %196 = vmatpush1.msra.mxu0 %v146
    %197 = vmatprep.subr.mxu0 0.0
    %198 = vmatpush2.msra.mxu0 0.0
    %199 = vmatprep.subr.mxu0 0.0
    %200 = vmatpush2.msra.mxu0 0.0
    %201 = vmatprep.subr.mxu0 0.0
    %202 = vmatpush2.msra.mxu0 0.0
    %203 = vmatprep.subr.mxu0 0.0
    %204 = vmatpush2.msra.mxu0 0.0
    %205 = vmatprep.subr.mxu0 0.0
    %206 = vmatpush2.msra.mxu0 0.0
    %207 = vmatprep.subr.mxu0 0.0
    %208 = vmatpush2.msra.mxu0 0.0
    %209 = vmatprep.subr.mxu0 0.0
    %210 = vmatpush2.msra.mxu0 0.0
    %211 = vmatprep.subr.mxu0 0.0
    %212 = vmatpush2.msra.mxu0 0.0
    %213 = vmatprep.subr.mxu0 0.0
    %214 = vmatpush2.msra.mxu0 0.0
    %215 = vmatprep.subr.mxu0 0.0
    %216 = vmatpush2.msra.mxu0 0.0
    %217 = vmatprep.subr.mxu0 0.0
    %218 = vmatpush2.msra.mxu0 0.0
    %219 = vmatprep.subr.mxu0 0.0
    %220 = vmatpush2.msra.mxu0 0.0
    %221 = vmatprep.subr.mxu0 0.0
    %222 = vmatpush2.msra.mxu0 0.0
    %223 = vmatprep.subr.mxu0 0.0
    %224 = vmatpush2.msra.mxu0 0.0
    %225 = vmatprep.subr.mxu0 0.0
    %226 = vmatpush2.msra.mxu0 0.0
    %227 = vmatprep.subr.mxu0 0.0
    %228 = vmatpush2.msra.mxu0 0.0
    %229 = vmatprep.mubr.f32.mxu0 0.0
    %230 = vmatmul.mubr.f32.gmra.mxu0 %v163
    %v231 = vpop.f32.mrf.mxu0
    %v232 = vadd.f32 %v159, %v231
    %v233 = vpop.f32.mrf.mxu0
    %234 = vdwg.mxu0
    %235 = vst [vmem:[#allocation8] sm:$0xff] %v232
    // Predicated region
    $region34: #{tpu_custom_call.1} parent=1 // pred_check
      _
    $region35: #{tpu_custom_call.1} parent=1 // pred_check_branch
      %237 = sbr.rel (0) target = $region37
    $region36: #{tpu_custom_call.1} parent=1 // pred_region
      %s239 = ssub.s32 128, 128
      %240 = vsyncadd [#allocation4], %s239
      %s242 = sshll.u32 [#allocation8], 4
      %s243 = int_to_ptr.vmem [resolvable:$true] %s242
      %245 = dma.vmem_to_hbm [thread:$0]  %s243, 128, %s5, [#allocation4]
    $region37: #{tpu_custom_call.1} parent=1 // pred_fallthru
      _
    // Predicated region
    $region38: #{tpu_custom_call.1} parent=1 // pred_check
      _
    $region39: #{tpu_custom_call.1} parent=1 // pred_check_branch
      %247 = sbr.rel (0) target = $region41
    $region40: #{tpu_custom_call.1} parent=1 // pred_region
      %248 = dma.done [#allocation4], 128
    $region41: #{tpu_custom_call.1} parent=1 // pred_fallthru
      _
    %249 = vsyncpa [#allocation3], 1
    %250 = vsyncpa [#allocation6], 1
    %251 = vsyncpa [#allocation4], 1

</llo_original>
